<compile_context>
chip_gen: v7x
topology: tpu7x:2x2x1
jax: 0.10.0
libtpu: 0.0.40
codegen_flags: <defaults>
</compile_context>

<pallas_src>
import jax
import jax.numpy as jnp
from jax.experimental import pallas as pl
from jax.experimental.pallas import tpu as pltpu


def _fused_kernel(gate_ref, w_ref, x_ref, o_ref):
    # gate_ref: (1, 1, C)    per-batch channel gate (pre-sigmoid), f32
    # w_ref:    (TCO, C)     tile of the (C_out, C_in) 1x1-conv weight, f32
    # x_ref:    (1, C, HW)   per-batch input, channels on sublanes, HW on lanes
    # o_ref:    (1, TCO, HW)
    g = jax.nn.sigmoid(gate_ref[0])                       # (1, C), f32
    # Fold the gate into the weight tile, then cast both MXU operands to bf16.
    w_scaled = (w_ref[...] * g).astype(jnp.bfloat16)      # (TCO, C)
    x_bf = x_ref[0].astype(jnp.bfloat16)                  # (C, HW)
    o_ref[0] = jnp.dot(
        w_scaled, x_bf, preferred_element_type=jnp.float32
    ).astype(o_ref.dtype)


def _pick_cout_tile(c_out: int) -> int:
    # Prefer >= 2 output-channel tiles (keeps both v7x TensorCores busy) while
    # keeping the block's second-to-last dim a multiple of 8.
    for n_tiles in (2, 4, 8, 7, 14, 16, 28):
        if c_out % n_tiles == 0 and (c_out // n_tiles) % 8 == 0:
            return c_out // n_tiles
    return c_out  # full extent is always a legal block


def sigmoid_mul_conv1x1(x31, x27, weight):
    """x31: (N, C, 1, 1), x27: (N, C, H, W), weight: (C_out, C_in, 1, 1).

    Returns (N, C_out, H, W), matching the PyTorch module semantics.
    """
    N, C, H, W = x27.shape
    C_out = weight.shape[0]
    HW = H * W
    TCO = _pick_cout_tile(C_out)
    n_cout_tiles = C_out // TCO

    # Pure reshapes only (no transposes): NCHW stays NCHW.
    x = x27.reshape(N, C, HW)                 # (N, C, HW)
    gate = x31.reshape(N, 1, C)               # (N, 1, C)
    w = weight.reshape(C_out, C)              # (C_out, C_in)

    flops = 2 * N * HW * C * C_out
    bytes_accessed = (
        x.size * x.dtype.itemsize
        + w.size * w.dtype.itemsize * N * n_cout_tiles
        + gate.size * gate.dtype.itemsize
        + N * C_out * HW * x27.dtype.itemsize
    )

    out = pl.pallas_call(
        _fused_kernel,
        out_shape=jax.ShapeDtypeStruct((N, C_out, HW), x27.dtype),
        grid=(n_cout_tiles, N),
        in_specs=[
            pl.BlockSpec((1, 1, C), lambda j, b: (b, 0, 0)),     # gate
            pl.BlockSpec((TCO, C), lambda j, b: (j, 0)),         # weight tile
            pl.BlockSpec((1, C, HW), lambda j, b: (b, 0, 0)),    # x, full spatial
        ],
        out_specs=pl.BlockSpec((1, TCO, HW), lambda j, b: (b, j, 0)),
        compiler_params=pltpu.CompilerParams(
            dimension_semantics=("parallel", "parallel"),
        ),
        cost_estimate=pl.CostEstimate(
            flops=flops,
            transcendentals=N * C,
            bytes_accessed=bytes_accessed,
        ),
    )(gate, w, x)

    return out.reshape(N, C_out, H, W)


if __name__ == "__main__":
    key = jax.random.PRNGKey(0)
    k1, k2, k3 = jax.random.split(key, 3)

    # Small shapes consistent with the module: Conv2d(224, 224, 1x1) fixes the
    # channel count; use a reduced 16x16 spatial extent and batch 1.
    N, C, H, W = 1, 224, 16, 16
    x27 = jax.random.normal(k1, (N, C, H, W), dtype=jnp.float32)
    x31 = jax.random.normal(k2, (N, C, 1, 1), dtype=jnp.float32)
    # Deterministic synthetic Conv2d weight (224, 224, 1, 1), no bias.
    weight = jax.random.normal(k3, (C, C, 1, 1), dtype=jnp.float32) * (1.0 / jnp.sqrt(C))

    out = sigmoid_mul_conv1x1(x31, x27, weight)
    out = jax.block_until_ready(out)

    # Pure-JAX f32 reference.
    gated = jax.nn.sigmoid(x31) * x27                               # (N, C, H, W)
    ref = jnp.einsum("nchw,oc->nohw", gated, weight.reshape(C, C))
    assert out.shape == (N, C, H, W)
    # bf16 MXU operands with f32 accumulation -> compare at bf16-level tolerance.
    assert jnp.allclose(out, ref, atol=1e-2, rtol=1e-2), float(
        jnp.max(jnp.abs(out - ref))
    )

    print("KERNEL_OK")
</pallas_src>

<mosaic_0001>
module attributes {stable_mosaic.version = 11 : i64} {
  func.func @_fused_kernel(%arg0: i32, %arg1: i32, %arg2: memref<1x1x224xf32, #tpu.memory_space<vmem>>, %arg3: memref<112x224xf32, #tpu.memory_space<vmem>>, %arg4: memref<1x224x256xf32, #tpu.memory_space<vmem>>, %arg5: memref<1x112x256xf32, #tpu.memory_space<vmem>>) attributes {dimension_semantics = [#tpu.dimension_semantics<parallel>, #tpu.dimension_semantics<parallel>], iteration_bounds = array<i64: 2, 1>, scalar_prefetch = 0 : i64, scratch_operands = 0 : i64, tpu.core_type = #tpu.core_type<tc>, window_params = [{transform_indices = @transform_0, window_bounds = array<i64: 1, 1, 224>}, {transform_indices = @transform_1, window_bounds = array<i64: 112, 224>}, {transform_indices = @transform_2, window_bounds = array<i64: 1, 224, 256>}, {transform_indices = @transform_3, window_bounds = array<i64: 1, 112, 256>}]} {
    %c0 = arith.constant 0 : index
    %c0_0 = arith.constant 0 : index
    %c0_1 = arith.constant 0 : index
    %0 = vector.load %arg2[%c0, %c0_0, %c0_1] : memref<1x1x224xf32, #tpu.memory_space<vmem>>, vector<1x1x224xf32>
    %1 = vector.shape_cast %0 : vector<1x1x224xf32> to vector<1x224xf32>
    %2 = arith.negf %1 : vector<1x224xf32>
    %3 = math.exp %2 : vector<1x224xf32>
    %cst = arith.constant 1.000000e+00 : f32
    %4 = vector.broadcast %cst : f32 to vector<1x224xf32>
    %5 = arith.addf %4, %3 : vector<1x224xf32>
    %6 = arith.divf %4, %5 : vector<1x224xf32>
    %c0_2 = arith.constant 0 : index
    %c0_3 = arith.constant 0 : index
    %7 = vector.load %arg3[%c0_2, %c0_3] : memref<112x224xf32, #tpu.memory_space<vmem>>, vector<112x224xf32>
    %8 = vector.broadcast %6 : vector<1x224xf32> to vector<112x224xf32>
    %9 = arith.mulf %7, %8 : vector<112x224xf32>
    %10 = arith.truncf %9 : vector<112x224xf32> to vector<112x224xbf16>
    %c0_4 = arith.constant 0 : index
    %c0_5 = arith.constant 0 : index
    %c0_6 = arith.constant 0 : index
    %11 = vector.load %arg4[%c0_4, %c0_5, %c0_6] : memref<1x224x256xf32, #tpu.memory_space<vmem>>, vector<1x224x256xf32>
    %12 = vector.shape_cast %11 : vector<1x224x256xf32> to vector<224x256xf32>
    %13 = arith.truncf %12 : vector<224x256xf32> to vector<224x256xbf16>
    %cst_7 = arith.constant dense<0.000000e+00> : vector<112x256xf32>
    %14 = tpu.matmul %10, %13, %cst_7 {dimension_numbers = #tpu.dot_dimension_numbers<[1], [0], [0], [1], [0, 0, 1, 1], [], []>} : vector<112x224xbf16>, vector<224x256xbf16>, vector<112x256xf32> -> vector<112x256xf32>
    %c0_8 = arith.constant 0 : index
    %c0_9 = arith.constant 0 : index
    %c0_10 = arith.constant 0 : index
    %15 = vector.load %arg5[%c0_8, %c0_9, %c0_10] : memref<1x112x256xf32, #tpu.memory_space<vmem>>, vector<1x112x256xf32>
    %16 = vector.shape_cast %15 : vector<1x112x256xf32> to vector<112x256xf32>
    %17 = vector.shape_cast %14 : vector<112x256xf32> to vector<1x112x256xf32>
    tpu.vector_store %arg5[%c0_8, %c0_9, %c0_10], %17 {strides = array<i32>} : memref<1x112x256xf32, #tpu.memory_space<vmem>>, vector<1x112x256xf32>,
    return
  }
  func.func @transform_0(%arg0: i32, %arg1: i32) -> (i32, i32, i32) {
    %c0_i32 = arith.constant 0 : i32
    %c0_i32_0 = arith.constant 0 : i32
    %c0_i32_1 = arith.constant 0 : i32
    return %arg1, %c0_i32, %c0_i32_0 : i32, i32, i32
  }
  func.func @transform_1(%arg0: i32, %arg1: i32) -> (i32, i32) {
    %c0_i32 = arith.constant 0 : i32
    %c0_i32_0 = arith.constant 0 : i32
    return %arg0, %c0_i32 : i32, i32
  }
  func.func @transform_2(%arg0: i32, %arg1: i32) -> (i32, i32, i32) {
    %c0_i32 = arith.constant 0 : i32
    %c0_i32_0 = arith.constant 0 : i32
    %c0_i32_1 = arith.constant 0 : i32
    return %arg1, %c0_i32, %c0_i32_0 : i32, i32, i32
  }
  func.func @transform_3(%arg0: i32, %arg1: i32) -> (i32, i32, i32) {
    %c0_i32 = arith.constant 0 : i32
    %c0_i32_0 = arith.constant 0 : i32
    return %arg1, %arg0, %c0_i32 : i32, i32, i32
  }
}

</mosaic_0001>

<llo_original>
// kernel: tpu_custom_call.1
$region0: #{tpu_custom_call.1}
  #allocation0 [shape = 'u32[]', space=smem, size = 0x4, offset = 0x4, fixed_abs, tag = 'smem constant byte address 0x4 - core index']
  #allocation1 [shape = 'u32[144,128]{1,0:T(1,128)}', space=vmem, size = 0x12000, scoped, tag = 'internal scratch']
  %s0 = inlined_call_operand.hbm [shape: f32[1,1,224], index: 0, kind: input, shape index: {}]
  %s1 = inlined_call_operand.hbm [shape: f32[224,224], index: 1, kind: input, shape index: {}]
  %s2 = inlined_call_operand.hbm [shape: f32[1,224,256], index: 2, kind: input, shape index: {}]
  %s3 = inlined_call_operand.hbm [shape: f32[1,224,256], index: 3, kind: output, shape index: {}]
  %s4 = sld [smem:[#allocation0]]
  $region57: #{tpu_custom_call.1} parent=0
    _
  %s6 = ssub.s32 1, %s4
  %s7 = scalar_select 0, %s6, %s4
  $region1: #{tpu_custom_call.1} parent=0
    #allocation2 [shape = 'u8[1024]{0}', space=vmem, size = 0x400, scoped, tag = 'input window, operand 0, single buffered']
    #allocation3 [shape = 's32[2]{0}', space=sflag, size = 0x8, scoped, tag = 'scoped memory for tpu_custom_call.1']
    #allocation4 [shape = 's32[2]{0}', space=sflag, size = 0x8, scoped, tag = 'scoped memory for tpu_custom_call.1']
    #allocation5 [shape = 'u8[229376]{0}', space=vmem, size = 0x38000, scoped, tag = 'input window, operand 1']
    #allocation6 [shape = 's32[2]{0}', space=sflag, size = 0x8, scoped, tag = 'scoped memory for tpu_custom_call.1']
    #allocation7 [shape = 'u8[229376]{0}', space=vmem, size = 0x38000, scoped, tag = 'input window, operand 2, single buffered']
    #allocation8 [shape = 'u8[229376]{0}', space=vmem, size = 0x38000, scoped, tag = 'output window, operand 0']
    %8 = vsyncpa [#allocation3], 0
    %9 = vsyncpa [#allocation6], 0
    %s10 = scalar_lea.sflag [#allocation6], 1
    %11 = vsyncpa %s10, 0
    %12 = vsyncpa [#allocation4], 0
    %s13 = scalar_lea.sflag [#allocation4], 1
    %14 = vsyncpa %s13, 0
    loop: start=0, step=1, limit=4
    $region2: #{tpu_custom_call.1} parent=1 // loop_pre_header
      _
    $region3: #{tpu_custom_call.1} parent=1 // loop_header
      %s16 = sphi 0, %s20
      %p17 = scmp.ge.s32.totalorder %s16, 4
      %s23 = sphi 0, %s35
      %s24 = sphi 0, %s31
      %s25 = sphi 0, %s23
      %s26 = sphi 0, %s24
      %s27 = sphi 0, %s25
      %s28 = sphi 0, %s26
      %s38 = sphi 0, %s40
      %s41 = sphi 0, %s38
      %s42 = sphi 0, %s41
      %s58 = sphi 0, %s42
      %s64 = sphi 0, %s66
      %s67 = sphi 0, %s64
      %s68 = sphi 0, %s67
      %s84 = sphi 0, %s68
      %s90 = sphi 0, %s92
      %s93 = sphi 0, %s90
      %s94 = sphi 0, %s93
      %s110 = sphi 0, %s94
      %s118 = sphi 0, %s120
      %s121 = sphi 0, %s118
      %s122 = sphi 0, %s121
      %s138 = sphi 0, %s122
    $region4: #{tpu_custom_call.1} parent=1 // loop_header_branch
      %19 = sbr.rel (%p17) target = $region8
    $region5: #{tpu_custom_call.1} parent=1 // loop_body
      %s21 = ssub.s32 %s16, 1
      %s22 = ssub.s32 %s16, 2
      %s29 = sadd.s32 1, %s24
      %p30 = scmp.ge.s32.totalorder %s29, 1
      %s31 = scalar_select %p30, 0, %s29
      %s32 = sadd.s32 1, %s23
      %s33 = scalar_select %p30, %s32, %s23
      %p34 = scmp.ge.s32.totalorder %s33, 2
      %s35 = scalar_select %p34, 0, %s33
      %s36 = ssub.s32 %s24, %s31
      %p37 = scmp.eq.s32.totalorder %s36, 0
      %s39 = sadd.s32 %s38, 1
      %s40 = scalar_select %p37, %s38, %s39
      %p43 = pneg %p37
      %p44 = scmp.eq.s32.totalorder %s16, 1
      %p45 = por %p43, %p44
      %p46 = scmp.ne.s32.totalorder %s38, %s41
      %p47 = scmp.eq.s32.totalorder %s16, 0
      %p48 = por %p46, %p47
      %p49 = scmp.ne.s32.totalorder %s38, %s41
      %p50 = scmp.eq.s32.totalorder %s21, 1
      %p51 = por %p49, %p50
      %p52 = scmp.ne.s32.totalorder %s41, %s42
      %p53 = scmp.eq.s32.totalorder %s21, 0
      %p54 = por %p52, %p53
      %p55 = scmp.ne.s32.totalorder %s41, %s42
      %p56 = scmp.eq.s32.totalorder %s22, 1
      %p57 = por %p55, %p56
      %p59 = scmp.ne.s32.totalorder %s42, %s58
      %p60 = scmp.eq.s32.totalorder %s22, 0
      %p61 = por %p59, %p60
      %s62 = ssub.s32 %s23, %s35
      %p63 = scmp.eq.s32.totalorder %s62, 0
      %s65 = sadd.s32 %s64, 1
      %s66 = scalar_select %p63, %s64, %s65
      %p69 = pneg %p63
      %p70 = scmp.eq.s32.totalorder %s16, 1
      %p71 = por %p69, %p70
      %p72 = scmp.ne.s32.totalorder %s64, %s67
      %p73 = scmp.eq.s32.totalorder %s16, 0
      %p74 = por %p72, %p73
      %p75 = scmp.ne.s32.totalorder %s64, %s67
      %p76 = scmp.eq.s32.totalorder %s21, 1
      %p77 = por %p75, %p76
      %p78 = scmp.ne.s32.totalorder %s67, %s68
      %p79 = scmp.eq.s32.totalorder %s21, 0
      %p80 = por %p78, %p79
      %p81 = scmp.ne.s32.totalorder %s67, %s68
      %p82 = scmp.eq.s32.totalorder %s22, 1
      %p83 = por %p81, %p82
      %p85 = scmp.ne.s32.totalorder %s68, %s84
      %p86 = scmp.eq.s32.totalorder %s22, 0
      %p87 = por %p85, %p86
      %s88 = ssub.s32 %s24, %s31
      %p89 = scmp.eq.s32.totalorder %s88, 0
      %s91 = sadd.s32 %s90, 1
      %s92 = scalar_select %p89, %s90, %s91
      %p95 = pneg %p89
      %p96 = scmp.eq.s32.totalorder %s16, 1
      %p97 = por %p95, %p96
      %p98 = scmp.ne.s32.totalorder %s90, %s93
      %p99 = scmp.eq.s32.totalorder %s16, 0
      %p100 = por %p98, %p99
      %p101 = scmp.ne.s32.totalorder %s90, %s93
      %p102 = scmp.eq.s32.totalorder %s21, 1
      %p103 = por %p101, %p102
      %p104 = scmp.ne.s32.totalorder %s93, %s94
      %p105 = scmp.eq.s32.totalorder %s21, 0
      %p106 = por %p104, %p105
      %p107 = scmp.ne.s32.totalorder %s93, %s94
      %p108 = scmp.eq.s32.totalorder %s22, 1
      %p109 = por %p107, %p108
      %p111 = scmp.ne.s32.totalorder %s94, %s110
      %p112 = scmp.eq.s32.totalorder %s22, 0
      %p113 = por %p111, %p112
      %s114 = ssub.s32 %s24, %s31
      %s115 = ssub.s32 %s23, %s35
      %s116 = sor.u32 %s114, %s115
      %p117 = scmp.eq.s32.totalorder %s116, 0
      %s119 = sadd.s32 %s118, 1
      %s120 = scalar_select %p117, %s118, %s119
      %p123 = pneg %p117
      %p124 = scmp.eq.s32.totalorder %s16, 1
      %p125 = por %p123, %p124
      %p126 = scmp.ne.s32.totalorder %s118, %s121
      %p127 = scmp.eq.s32.totalorder %s16, 0
      %p128 = por %p126, %p127
      %p129 = scmp.ne.s32.totalorder %s118, %s121
      %p130 = scmp.eq.s32.totalorder %s21, 1
      %p131 = por %p129, %p130
      %p132 = scmp.ne.s32.totalorder %s121, %s122
      %p133 = scmp.eq.s32.totalorder %s21, 0
      %p134 = por %p132, %p133
      %p135 = scmp.ne.s32.totalorder %s121, %s122
      %p136 = scmp.eq.s32.totalorder %s22, 1
      %p137 = por %p135, %p136
      %p139 = scmp.ne.s32.totalorder %s122, %s138
      %p140 = scmp.eq.s32.totalorder %s22, 0
      %p141 = por %p139, %p140
      %p142 = scmp.le.s32.totalorder 1, %s16
      %p143 = scmp.lt.s32.totalorder %s16, 3
      %p144 = pnand %p142, %p143
      %p145 = pneg %p144
      // Predicated region
      $region9: #{tpu_custom_call.1} parent=5 // pred_check
        _
      $region10: #{tpu_custom_call.1} parent=5 // pred_check_branch
        %147 = sbr.rel (%p144) target = $region12
      $region11: #{tpu_custom_call.1} parent=5 // pred_region
        %s148 = ssub.s32 %s16, 1
        // Predicated region
        $region13: #{tpu_custom_call.1} parent=11 // pred_check
          %p149 = pneg %p54
        $region14: #{tpu_custom_call.1} parent=11 // pred_check_branch
          %151 = sbr.rel (%p149) target = $region16
        $region15: #{tpu_custom_call.1} parent=11 // pred_region
          %s153 = ssub.s32 32, 32
          %154 = vsyncadd [#allocation3], %s153
          %s155 = smul.addr %s26, 2
          %s156 = smul.addr %s155, 16
          %s157 = scalar_lea.hbm %s0, %s156
          %s159 = sshll.u32 [#allocation2], 4
          %s160 = int_to_ptr.vmem [resolvable:$true] %s159
          %162 = dma.hbm_to_vmem [thread:$0]  %s157, 32, %s160, [#allocation3]
        $region16: #{tpu_custom_call.1} parent=11 // pred_fallthru
          _
        // Predicated region
        $region17: #{tpu_custom_call.1} parent=11 // pred_check
          %p163 = pneg %p106
        $region18: #{tpu_custom_call.1} parent=11 // pred_check_branch
          %165 = sbr.rel (%p163) target = $region20
        $region19: #{tpu_custom_call.1} parent=11 // pred_region
          %s167 = ssub.s32 7168, 7168
          %168 = vsyncadd [#allocation6], %s167
          %s169 = smul.addr %s26, 56
          %s170 = smul.addr %s169, 128
          %s171 = scalar_lea.hbm %s2, %s170
          %s172 = sshll.u32 [#allocation7], 4
          %s173 = int_to_ptr.vmem [resolvable:$true] %s172
          %178 = dma.hbm_to_vmem [thread:$0]  %s171, 7168, %s173, [#allocation6], 256, 256, 16
        $region20: #{tpu_custom_call.1} parent=11 // pred_fallthru
          _
      $region12: #{tpu_custom_call.1} parent=5 // pred_fallthru
        _
      %p179 = scmp.lt.s32.totalorder %s16, 2
      // Predicated region
      $region21: #{tpu_custom_call.1} parent=5 // pred_check
        %p180 = pneg %p179
      $region22: #{tpu_custom_call.1} parent=5 // pred_check_branch
        %182 = sbr.rel (%p180) target = $region24
      $region23: #{tpu_custom_call.1} parent=5 // pred_region
        // Predicated region
        $region25: #{tpu_custom_call.1} parent=23 // pred_check
          %p183 = pneg %p74
        $region26: #{tpu_custom_call.1} parent=23 // pred_check_branch
          %185 = sbr.rel (%p183) target = $region28
        $region27: #{tpu_custom_call.1} parent=23 // pred_region
          %s186 = sand.u32 %s16, 1
          %s187 = scalar_lea.sflag [#allocation6], %s186
          %s188 = sand.u32 %s64, 1
          %s189 = smul.addr %s188, 224
          %s190 = scalar_lea.vmem [#allocation5], %s189
          %s191 = smul.u32 14, %s23
          %s193 = ssub.s32 3584, 3584
          %194 = vsyncadd %s187, %s193
          %s195 = smul.addr %s191, 2
          %s196 = smul.addr %s195, 128
          %s197 = scalar_lea.hbm %s1, %s196
          %s198 = sshll.u32 %s190, 4
          %s199 = int_to_ptr.vmem [resolvable:$true] %s198
          %204 = dma.hbm_to_vmem [thread:$0]  %s197, 3584, %s199, %s187, 256, 256, 16
        $region28: #{tpu_custom_call.1} parent=23 // pred_fallthru
          _
      $region24: #{tpu_custom_call.1} parent=5 // pred_fallthru
        _
      %p205 = scmp.le.s32.totalorder 1, %s16
      %p206 = scmp.lt.s32.totalorder %s16, 3
      %p207 = pnand %p205, %p206
      %p208 = pneg %p207
      // Predicated region
      $region29: #{tpu_custom_call.1} parent=5 // pred_check
        _
      $region30: #{tpu_custom_call.1} parent=5 // pred_check_branch
        %210 = sbr.rel (%p207) target = $region32
      $region31: #{tpu_custom_call.1} parent=5 // pred_region
        %s211 = ssub.s32 %s16, 1
        // Predicated region
        $region33: #{tpu_custom_call.1} parent=31 // pred_check
          %p212 = pneg %p54
        $region34: #{tpu_custom_call.1} parent=31 // pred_check_branch
          %214 = sbr.rel (%p212) target = $region36
        $region35: #{tpu_custom_call.1} parent=31 // pred_region
          %215 = dma.done [#allocation3], 32
        $region36: #{tpu_custom_call.1} parent=31 // pred_fallthru
          _
        %s216 = sand.u32 %s21, 1
        %s217 = scalar_lea.sflag [#allocation6], %s216
        %s218 = sand.u32 %s67, 1
        %s219 = smul.addr %s218, 224
        %s220 = scalar_lea.vmem [#allocation5], %s219
        // Predicated region
        $region37: #{tpu_custom_call.1} parent=31 // pred_check
          %p221 = pneg %p80
        $region38: #{tpu_custom_call.1} parent=31 // pred_check_branch
          %223 = sbr.rel (%p221) target = $region40
        $region39: #{tpu_custom_call.1} parent=31 // pred_region
          %224 = dma.done %s217, 3584
        $region40: #{tpu_custom_call.1} parent=31 // pred_fallthru
          _
        // Predicated region
        $region41: #{tpu_custom_call.1} parent=31 // pred_check
          %p225 = pneg %p106
        $region42: #{tpu_custom_call.1} parent=31 // pred_check_branch
          %227 = sbr.rel (%p225) target = $region44
        $region43: #{tpu_custom_call.1} parent=31 // pred_region
          %228 = dma.done [#allocation6], 7168
        $region44: #{tpu_custom_call.1} parent=31 // pred_fallthru
          _
        %p229 = pneg %p54
        %p230 = pneg %p51
        %s231 = sand.u32 %s21, 1
        %s232 = scalar_lea.sflag [#allocation6], %s231
        %s233 = sand.u32 %s67, 1
        %s234 = smul.addr %s233, 224
        %s235 = scalar_lea.vmem [#allocation5], %s234
        %p236 = pneg %p80
        %p237 = pneg %p77
        %p238 = pneg %p106
        %p239 = pneg %p103
        %p240 = pneg %p134
        %p241 = pneg %p131
        %s242 = sand.u32 %s121, 1
        %s243 = scalar_lea.sflag [#allocation4], %s242
        %s244 = sand.u32 %s121, 1
        %s245 = smul.addr %s244, 224
        %s246 = scalar_lea.vmem [#allocation8], %s245
        %s247 = smul.u32 14, %s25
        %s248 = smul.u32 14, %s25
        %v250 = vld [vmem:[#allocation2] sm:$0x3]
        %v251 = vxor.u32 %v250, 2147483648
        %v252 = vmul.f32 %v251, 1.442695
        %v253 = vpow.pop %v252
        %v254 = vadd.f32 %v253, 1.0
        %v255 = vrcp.pop %v254
        %v256 = vmul.f32 1.0, %v255
        %v257 = vld [vmem:[%s220] sm:$0xff]
        %v258 = vld [vmem:[%s220 + $0x8] sm:$0xff]
        %v259 = vld [vmem:[%s220 + $0x10] sm:$0xff]
        %v260 = vld [vmem:[%s220 + $0x18] sm:$0xff]
        %v261 = vld [vmem:[%s220 + $0x20] sm:$0xff]
        %v262 = vld [vmem:[%s220 + $0x28] sm:$0xff]
        %v263 = vld [vmem:[%s220 + $0x30] sm:$0xff]
        %v264 = vld [vmem:[%s220 + $0x38] sm:$0xff]
        %v265 = vld [vmem:[%s220 + $0x40] sm:$0xff]
        %v266 = vld [vmem:[%s220 + $0x48] sm:$0xff]
        %v267 = vld [vmem:[%s220 + $0x50] sm:$0xff]
        %v268 = vld [vmem:[%s220 + $0x58] sm:$0xff]
        %v269 = vld [vmem:[%s220 + $0x60] sm:$0xff]
        %v270 = vld [vmem:[%s220 + $0x68] sm:$0xff]
        %v271 = vld [vmem:[%s220 + $0x70] sm:$0xff]
        %v272 = vld [vmem:[%s220 + $0x78] sm:$0xff]
        %v273 = vld [vmem:[%s220 + $0x80] sm:$0xff]
        %v274 = vld [vmem:[%s220 + $0x88] sm:$0xff]
        %v275 = vld [vmem:[%s220 + $0x90] sm:$0xff]
        %v276 = vld [vmem:[%s220 + $0x98] sm:$0xff]
        %v277 = vld [vmem:[%s220 + $0xa0] sm:$0xff]
        %v278 = vld [vmem:[%s220 + $0xa8] sm:$0xff]
        %v279 = vld [vmem:[%s220 + $0xb0] sm:$0xff]
        %v280 = vld [vmem:[%s220 + $0xb8] sm:$0xff]
        %v281 = vld [vmem:[%s220 + $0xc0] sm:$0xff]
        %v282 = vld [vmem:[%s220 + $0xc8] sm:$0xff]
        %v283 = vld [vmem:[%s220 + $0xd0] sm:$0xff]
        %v284 = vld [vmem:[%s220 + $0xd8] sm:$0xff]
        %v286 = vlaneseq
        %v287 = vshrl.u32 %v286, 7
        %v288 = vsub.s32 0, %v287
        %v289 = vrot.slane %v256, %v288
        %v290 = vlaneseq
        %v291 = vshrl.u32 %v290, 7
        %v292 = vsub.s32 1, %v291
        %v293 = vrot.slane %v256, %v292
        %v296 = vmul.f32 %v257, %v289
        %v297 = vmul.f32 %v258, %v293
        %v298 = vmul.f32 %v259, %v289
        %v299 = vmul.f32 %v260, %v293
        %v300 = vmul.f32 %v261, %v289
        %v301 = vmul.f32 %v262, %v293
        %v302 = vmul.f32 %v263, %v289
        %v303 = vmul.f32 %v264, %v293
        %v304 = vmul.f32 %v265, %v289
        %v305 = vmul.f32 %v266, %v293
        %v306 = vmul.f32 %v267, %v289
        %v307 = vmul.f32 %v268, %v293
        %v308 = vmul.f32 %v269, %v289
        %v309 = vmul.f32 %v270, %v293
        %v310 = vmul.f32 %v271, %v289
        %v311 = vmul.f32 %v272, %v293
        %v312 = vmul.f32 %v273, %v289
        %v313 = vmul.f32 %v274, %v293
        %v314 = vmul.f32 %v275, %v289
        %v315 = vmul.f32 %v276, %v293
        %v316 = vmul.f32 %v277, %v289
        %v317 = vmul.f32 %v278, %v293
        %v318 = vmul.f32 %v279, %v289
        %v319 = vmul.f32 %v280, %v293
        %v320 = vmul.f32 %v281, %v289
        %v321 = vmul.f32 %v282, %v293
        %v322 = vmul.f32 %v283, %v289
        %v323 = vmul.f32 %v284, %v293
        %v324 = vpack.c.bf16 %v298, %v296
        %v325 = vpack.c.bf16 %v299, %v297
        %v326 = vpack.c.bf16 %v302, %v300
        %v327 = vpack.c.bf16 %v303, %v301
        %v328 = vpack.c.bf16 %v306, %v304
        %v329 = vpack.c.bf16 %v307, %v305
        %v330 = vpack.c.bf16 %v310, %v308
        %v331 = vpack.c.bf16 %v311, %v309
        %v332 = vpack.c.bf16 %v314, %v312
        %v333 = vpack.c.bf16 %v315, %v313
        %v334 = vpack.c.bf16 %v318, %v316
        %v335 = vpack.c.bf16 %v319, %v317
        %v336 = vpack.c.bf16 %v322, %v320
        %v337 = vpack.c.bf16 %v323, %v321
        %v338 = vld [vmem:[#allocation7] sm:$0xff]
        %v339 = vld [vmem:[#allocation7 + $0x8] sm:$0xff]
        %v340 = vld [vmem:[#allocation7 + $0x10] sm:$0xff]
        %v341 = vld [vmem:[#allocation7 + $0x18] sm:$0xff]
        %v342 = vld [vmem:[#allocation7 + $0x20] sm:$0xff]
        %v343 = vld [vmem:[#allocation7 + $0x28] sm:$0xff]
        %v344 = vld [vmem:[#allocation7 + $0x30] sm:$0xff]
        %v345 = vld [vmem:[#allocation7 + $0x38] sm:$0xff]
        %v346 = vld [vmem:[#allocation7 + $0x40] sm:$0xff]
        %v347 = vld [vmem:[#allocation7 + $0x48] sm:$0xff]
        %v348 = vld [vmem:[#allocation7 + $0x50] sm:$0xff]
        %v349 = vld [vmem:[#allocation7 + $0x58] sm:$0xff]
        %v350 = vld [vmem:[#allocation7 + $0x60] sm:$0xff]
        %v351 = vld [vmem:[#allocation7 + $0x68] sm:$0xff]
        %v352 = vld [vmem:[#allocation7 + $0x70] sm:$0xff]
        %v353 = vld [vmem:[#allocation7 + $0x78] sm:$0xff]
        %v354 = vld [vmem:[#allocation7 + $0x80] sm:$0xff]
        %v355 = vld [vmem:[#allocation7 + $0x88] sm:$0xff]
        %v356 = vld [vmem:[#allocation7 + $0x90] sm:$0xff]
        %v357 = vld [vmem:[#allocation7 + $0x98] sm:$0xff]
        %v358 = vld [vmem:[#allocation7 + $0xa0] sm:$0xff]
        %v359 = vld [vmem:[#allocation7 + $0xa8] sm:$0xff]
        %v360 = vld [vmem:[#allocation7 + $0xb0] sm:$0xff]
        %v361 = vld [vmem:[#allocation7 + $0xb8] sm:$0xff]
        %v362 = vld [vmem:[#allocation7 + $0xc0] sm:$0xff]
        %v363 = vld [vmem:[#allocation7 + $0xc8] sm:$0xff]
        %v364 = vld [vmem:[#allocation7 + $0xd0] sm:$0xff]
        %v365 = vld [vmem:[#allocation7 + $0xd8] sm:$0xff]
        %v366 = vld [vmem:[#allocation7 + $0xe0] sm:$0xff]
        %v367 = vld [vmem:[#allocation7 + $0xe8] sm:$0xff]
        %v368 = vld [vmem:[#allocation7 + $0xf0] sm:$0xff]
        %v369 = vld [vmem:[#allocation7 + $0xf8] sm:$0xff]
        %v370 = vld [vmem:[#allocation7 + $0x100] sm:$0xff]
        %v371 = vld [vmem:[#allocation7 + $0x108] sm:$0xff]
        %v372 = vld [vmem:[#allocation7 + $0x110] sm:$0xff]
        %v373 = vld [vmem:[#allocation7 + $0x118] sm:$0xff]
        %v374 = vld [vmem:[#allocation7 + $0x120] sm:$0xff]
        %v375 = vld [vmem:[#allocation7 + $0x128] sm:$0xff]
        %v376 = vld [vmem:[#allocation7 + $0x130] sm:$0xff]
        %v377 = vld [vmem:[#allocation7 + $0x138] sm:$0xff]
        %v378 = vld [vmem:[#allocation7 + $0x140] sm:$0xff]
        %v379 = vld [vmem:[#allocation7 + $0x148] sm:$0xff]
        %v380 = vld [vmem:[#allocation7 + $0x150] sm:$0xff]
        %v381 = vld [vmem:[#allocation7 + $0x158] sm:$0xff]
        %v382 = vld [vmem:[#allocation7 + $0x160] sm:$0xff]
        %v383 = vld [vmem:[#allocation7 + $0x168] sm:$0xff]
        %v384 = vld [vmem:[#allocation7 + $0x170] sm:$0xff]
        %v385 = vld [vmem:[#allocation7 + $0x178] sm:$0xff]
        %v386 = vld [vmem:[#allocation7 + $0x180] sm:$0xff]
        %v387 = vld [vmem:[#allocation7 + $0x188] sm:$0xff]
        %v388 = vld [vmem:[#allocation7 + $0x190] sm:$0xff]
        %v389 = vld [vmem:[#allocation7 + $0x198] sm:$0xff]
        %v390 = vld [vmem:[#allocation7 + $0x1a0] sm:$0xff]
        %v391 = vld [vmem:[#allocation7 + $0x1a8] sm:$0xff]
        %v392 = vld [vmem:[#allocation7 + $0x1b0] sm:$0xff]
        %v393 = vld [vmem:[#allocation7 + $0x1b8] sm:$0xff]
        %v394 = vpack.c.bf16 %v340, %v338
        %v395 = vpack.c.bf16 %v341, %v339
        %v396 = vpack.c.bf16 %v344, %v342
        %v397 = vpack.c.bf16 %v345, %v343
        %v398 = vpack.c.bf16 %v348, %v346
        %v399 = vpack.c.bf16 %v349, %v347
        %v400 = vpack.c.bf16 %v352, %v350
        %v401 = vpack.c.bf16 %v353, %v351
        %v402 = vpack.c.bf16 %v356, %v354
        %v403 = vpack.c.bf16 %v357, %v355
        %v404 = vpack.c.bf16 %v360, %v358
        %v405 = vpack.c.bf16 %v361, %v359
        %v406 = vpack.c.bf16 %v364, %v362
        %v407 = vpack.c.bf16 %v365, %v363
        %v408 = vpack.c.bf16 %v368, %v366
        %v409 = vpack.c.bf16 %v369, %v367
        %v410 = vpack.c.bf16 %v372, %v370
        %v411 = vpack.c.bf16 %v373, %v371
        %v412 = vpack.c.bf16 %v376, %v374
        %v413 = vpack.c.bf16 %v377, %v375
        %v414 = vpack.c.bf16 %v380, %v378
        %v415 = vpack.c.bf16 %v381, %v379
        %v416 = vpack.c.bf16 %v384, %v382
        %v417 = vpack.c.bf16 %v385, %v383
        %v418 = vpack.c.bf16 %v388, %v386
        %v419 = vpack.c.bf16 %v389, %v387
        %v420 = vpack.c.bf16 %v392, %v390
        %v421 = vpack.c.bf16 %v393, %v391
        %vm422 = vcmask 785408
        %v424 = vsel %vm422, %v325, 0
        %v427 = vsel %vm422, %v327, 0
        %v430 = vsel %vm422, %v329, 0
        %v433 = vsel %vm422, %v331, 0
        %v436 = vsel %vm422, %v333, 0
        %v439 = vsel %vm422, %v335, 0
        %v442 = vsel %vm422, %v337, 0
        %444 = vmatprep.subr.bf16.mxu0 %v395
        %445 = vmatpush1.bf16.msra.mxu0 %v394
        %446 = vmatprep.subr.bf16.mxu0 %v397
        %447 = vmatpush1.bf16.msra.mxu0 %v396
        %448 = vmatprep.subr.bf16.mxu0 %v399
        %449 = vmatpush1.bf16.msra.mxu0 %v398
        %450 = vmatprep.subr.bf16.mxu0 %v401
        %451 = vmatpush1.bf16.msra.mxu0 %v400
        %452 = vmatprep.subr.bf16.mxu0 %v403
        %453 = vmatpush1.bf16.msra.mxu0 %v402
        %454 = vmatprep.subr.bf16.mxu0 %v405
        %455 = vmatpush1.bf16.msra.mxu0 %v404
        %456 = vmatprep.subr.bf16.mxu0 %v407
        %457 = vmatpush1.bf16.msra.mxu0 %v406
        %458 = vmatprep.subr.bf16.mxu0 %v409
        %459 = vmatpush1.bf16.msra.mxu0 %v408
        %460 = vmatprep.subr.bf16.mxu0 %v411
        %461 = vmatpush1.bf16.msra.mxu0 %v410
        %462 = vmatprep.subr.bf16.mxu0 %v413
        %463 = vmatpush1.bf16.msra.mxu0 %v412
        %464 = vmatprep.subr.bf16.mxu0 %v415
        %465 = vmatpush1.bf16.msra.mxu0 %v414
        %466 = vmatprep.subr.bf16.mxu0 %v417
        %467 = vmatpush1.bf16.msra.mxu0 %v416
        %468 = vmatprep.subr.bf16.mxu0 %v419
        %469 = vmatpush1.bf16.msra.mxu0 %v418
        %470 = vmatprep.subr.bf16.mxu0 %v421
        %471 = vmatpush1.bf16.msra.mxu0 %v420
        %472 = vmatprep.subr.bf16.mxu0 0
        %473 = vmatpush1.bf16.msra.mxu0 0
        %474 = vmatprep.subr.bf16.mxu0 0
        %475 = vmatpush1.bf16.msra.mxu0 0
        %476 = vmatprep.mubr.bf16.mxu0 %v424
        %477 = vmatmul.mubr.bf16.gmra.mrb[0].mxu0 %v324
        %v478 = vpop.f32.mrb[0].mxu0
        %v479 = vadd.f32 0.0, %v478
        %v480 = vpop.f32.mrb[0].mxu0
        %v481 = vadd.f32 0.0, %v480
        %v482 = vpop.f32.mrb[0].mxu0
        %v483 = vadd.f32 0.0, %v482
        %v484 = vpop.f32.mrb[0].mxu0
        %v485 = vadd.f32 0.0, %v484
        %486 = vmatprep.mubr.bf16.mxu0 %v427
        %487 = vmatmul.mubr.bf16.gmra.mrb[0].mxu0 %v326
        %v488 = vpop.f32.mrb[0].mxu0
        %v489 = vadd.f32 0.0, %v488
        %v490 = vpop.f32.mrb[0].mxu0
        %v491 = vadd.f32 0.0, %v490
        %v492 = vpop.f32.mrb[0].mxu0
        %v493 = vadd.f32 0.0, %v492
        %v494 = vpop.f32.mrb[0].mxu0
        %v495 = vadd.f32 0.0, %v494
        %496 = vmatprep.mubr.bf16.mxu0 %v430
        %497 = vmatmul.mubr.bf16.gmra.mrb[0].mxu0 %v328
        %v498 = vpop.f32.mrb[0].mxu0
        %v499 = vadd.f32 0.0, %v498
        %v500 = vpop.f32.mrb[0].mxu0
        %v501 = vadd.f32 0.0, %v500
        %v502 = vpop.f32.mrb[0].mxu0
        %v503 = vadd.f32 0.0, %v502
        %v504 = vpop.f32.mrb[0].mxu0
        %v505 = vadd.f32 0.0, %v504
        %506 = vmatprep.mubr.bf16.mxu0 %v433
        %507 = vmatmul.mubr.bf16.gmra.mrb[0].mxu0 %v330
        %v508 = vpop.f32.mrb[0].mxu0
        %v509 = vadd.f32 0.0, %v508
        %v510 = vpop.f32.mrb[0].mxu0
        %v511 = vadd.f32 0.0, %v510
        %v512 = vpop.f32.mrb[0].mxu0
        %v513 = vadd.f32 0.0, %v512
        %v514 = vpop.f32.mrb[0].mxu0
        %v515 = vadd.f32 0.0, %v514
        %516 = vmatprep.mubr.bf16.mxu0 %v436
        %517 = vmatmul.mubr.bf16.gmra.mrb[0].mxu0 %v332
        %v518 = vpop.f32.mrb[0].mxu0
        %v519 = vadd.f32 0.0, %v518
        %v520 = vpop.f32.mrb[0].mxu0
        %v521 = vadd.f32 0.0, %v520
        %v522 = vpop.f32.mrb[0].mxu0
        %v523 = vadd.f32 0.0, %v522
        %v524 = vpop.f32.mrb[0].mxu0
        %v525 = vadd.f32 0.0, %v524
        %526 = vmatprep.mubr.bf16.mxu0 %v439
        %527 = vmatmul.mubr.bf16.gmra.mrb[0].mxu0 %v334
        %v528 = vpop.f32.mrb[0].mxu0
        %v529 = vadd.f32 0.0, %v528
        %v530 = vpop.f32.mrb[0].mxu0
        %v531 = vadd.f32 0.0, %v530
        %v532 = vpop.f32.mrb[0].mxu0
        %v533 = vadd.f32 0.0, %v532
        %v534 = vpop.f32.mrb[0].mxu0
        %v535 = vadd.f32 0.0, %v534
        %536 = vmatprep.mubr.bf16.mxu0 %v442
        %537 = vmatmul.mubr.bf16.gmra.mrb[0].mxu0 %v336
        %v538 = vpop.f32.mrb[0].mxu0
        %v539 = vadd.f32 0.0, %v538
        %v540 = vpop.f32.mrb[0].mxu0
        %v541 = vadd.f32 0.0, %v540
        %v542 = vpop.f32.mrb[0].mxu0
        %v543 = vadd.f32 0.0, %v542
        %v544 = vpop.f32.mrb[0].mxu0
        %v545 = vadd.f32 0.0, %v544
        %546 = vdwg.mxu0
        %547 = vst [vmem:[%s246] sm:$0xff] %v479
        %548 = vst [vmem:[%s246 + $0x8] sm:$0xff] %v481
        %549 = vst [vmem:[%s246 + $0x10] sm:$0xff] %v483
        %550 = vst [vmem:[%s246 + $0x18] sm:$0xff] %v485
        %551 = vst [vmem:[%s246 + $0x20] sm:$0xff] %v489
        %552 = vst [vmem:[%s246 + $0x28] sm:$0xff] %v491
        %553 = vst [vmem:[%s246 + $0x30] sm:$0xff] %v493
        %554 = vst [vmem:[%s246 + $0x38] sm:$0xff] %v495
        %555 = vst [vmem:[%s246 + $0x40] sm:$0xff] %v499
        %556 = vst [vmem:[%s246 + $0x48] sm:$0xff] %v501
        %557 = vst [vmem:[%s246 + $0x50] sm:$0xff] %v503
        %558 = vst [vmem:[%s246 + $0x58] sm:$0xff] %v505
        %559 = vst [vmem:[%s246 + $0x60] sm:$0xff] %v509
        %560 = vst [vmem:[%s246 + $0x68] sm:$0xff] %v511
        %561 = vst [vmem:[%s246 + $0x70] sm:$0xff] %v513
        %562 = vst [vmem:[%s246 + $0x78] sm:$0xff] %v515
        %563 = vst [vmem:[%s246 + $0x80] sm:$0xff] %v519
        %564 = vst [vmem:[%s246 + $0x88] sm:$0xff] %v521
        %565 = vst [vmem:[%s246 + $0x90] sm:$0xff] %v523
        %566 = vst [vmem:[%s246 + $0x98] sm:$0xff] %v525
        %567 = vst [vmem:[%s246 + $0xa0] sm:$0xff] %v529
        %568 = vst [vmem:[%s246 + $0xa8] sm:$0xff] %v531
        %569 = vst [vmem:[%s246 + $0xb0] sm:$0xff] %v533
        %570 = vst [vmem:[%s246 + $0xb8] sm:$0xff] %v535
        %571 = vst [vmem:[%s246 + $0xc0] sm:$0xff] %v539
        %572 = vst [vmem:[%s246 + $0xc8] sm:$0xff] %v541
        %573 = vst [vmem:[%s246 + $0xd0] sm:$0xff] %v543
        %574 = vst [vmem:[%s246 + $0xd8] sm:$0xff] %v545
        %s575 = sand.u32 %s121, 1
        %s576 = scalar_lea.sflag [#allocation4], %s575
        %s577 = sand.u32 %s121, 1
        %s578 = smul.addr %s577, 224
        %s579 = scalar_lea.vmem [#allocation8], %s578
        // Predicated region
        $region45: #{tpu_custom_call.1} parent=31 // pred_check
          %p580 = pneg %p131
        $region46: #{tpu_custom_call.1} parent=31 // pred_check_branch
          %582 = sbr.rel (%p580) target = $region48
        $region47: #{tpu_custom_call.1} parent=31 // pred_region
          %s583 = smul.u32 14, %s25
          %s585 = ssub.s32 3584, 3584
          %586 = vsyncadd %s576, %s585
          %s587 = smul.addr %s583, 2
          %s588 = smul.addr %s26, 56
          %s589 = sadd.s32 %s587, %s588
          %s590 = smul.addr %s589, 128
          %s591 = scalar_lea.hbm %s3, %s590
          %s592 = sshll.u32 %s579, 4
          %s593 = int_to_ptr.vmem [resolvable:$true] %s592
          %598 = dma.vmem_to_hbm [thread:$0]  %s593, 3584, %s591, %s576, 256, 256, 16
        $region48: #{tpu_custom_call.1} parent=31 // pred_fallthru
          _
      $region32: #{tpu_custom_call.1} parent=5 // pred_fallthru
        _
      %p599 = scmp.le.s32.totalorder 2, %s16
      // Predicated region
      $region49: #{tpu_custom_call.1} parent=5 // pred_check
        %p600 = pneg %p599
      $region50: #{tpu_custom_call.1} parent=5 // pred_check_branch
        %602 = sbr.rel (%p600) target = $region52
      $region51: #{tpu_custom_call.1} parent=5 // pred_region
        %s603 = ssub.s32 %s16, 2
        // Predicated region
        $region53: #{tpu_custom_call.1} parent=51 // pred_check
          %p604 = pneg %p137
        $region54: #{tpu_custom_call.1} parent=51 // pred_check_branch
          %606 = sbr.rel (%p604) target = $region56
        $region55: #{tpu_custom_call.1} parent=51 // pred_region
          %s607 = sand.u32 %s122, 1
          %s608 = scalar_lea.sflag [#allocation4], %s607
          %s609 = sand.u32 %s122, 1
          %s610 = smul.addr %s609, 224
          %s611 = scalar_lea.vmem [#allocation8], %s610
          %612 = dma.done %s608, 3584
        $region56: #{tpu_custom_call.1} parent=51 // pred_fallthru
          _
      $region52: #{tpu_custom_call.1} parent=5 // pred_fallthru
        _
    $region6: #{tpu_custom_call.1} parent=1 // loop_footer
      %s20 = sadd.s32 1, %s16
    $region7: #{tpu_custom_call.1} parent=1 // loop_footer_branch
      %15 = sbr.rel target = $region3
    $region8: #{tpu_custom_call.1} parent=1 // loop_exit
      _
    %613 = vsyncpa [#allocation3], 1
    %s614 = scalar_lea.sflag [#allocation3], 1
    %615 = vsyncpa %s614, 1
    %616 = vsyncpa [#allocation6], 1
    %s617 = scalar_lea.sflag [#allocation6], 1
    %618 = vsyncpa %s617, 1
    %619 = vsyncpa [#allocation4], 1
    %s620 = scalar_lea.sflag [#allocation4], 1
    %621 = vsyncpa %s620, 1

</llo_original>
